<compile_context>
chip_gen: v7x
topology: tpu7x:2x2x1
jax: 0.10.0
libtpu: 0.0.40
codegen_flags: <defaults>
</compile_context>

<pallas_src>
import jax
import jax.numpy as jnp
from jax.experimental import pallas as pl
from jax.experimental.pallas import tpu as pltpu

EPS = 1e-12  # torch F.normalize default eps


def _normalize_scale_kernel(x_ref, w_ref, o_ref):
    # x_ref: (tile_n, D) block, w_ref: (1, D) full weight, o_ref: (tile_n, D)
    x = x_ref[...].astype(jnp.float32)
    w = w_ref[...].astype(jnp.float32)
    # Sum of squares along the feature (lane) axis, keepdim for broadcast.
    ss = jnp.sum(x * x, axis=-1, keepdims=True)
    # 1 / max(||x||, eps) == rsqrt(max(ss, eps^2))  -> EUP, no vector divide.
    inv = jax.lax.rsqrt(jnp.maximum(ss, jnp.float32(EPS * EPS)))
    o_ref[...] = (x * inv * w).astype(o_ref.dtype)


def _pick_tile_n(n, d, itemsize):
    """Largest row tile (multiple of 8, <=1024) whose double-buffered in+out
    footprint stays within ~24 MiB (fits v7x's 64 MiB VMEM with headroom)."""
    budget_bytes = 24 * 1024 * 1024
    row_bytes = max(1, d * itemsize)
    # 2x double-buffered input block + 2x double-buffered output block.
    max_rows = budget_bytes // (4 * row_bytes)
    tile_n = int(min(1024, max(8, max_rows)))
    tile_n = max(8, (tile_n // 8) * 8)
    # Don't tile beyond the (8-padded) number of rows actually present.
    n_pad8 = ((n + 7) // 8) * 8
    return min(tile_n, n_pad8)


def normalize_scale(x, weight, *, tile_n=None):
    """x: (N, D) float array, weight: (1, D). Returns (N, D) in x.dtype."""
    N, D = x.shape
    assert weight.shape == (1, D)

    if tile_n is None:
        tile_n = _pick_tile_n(N, D, jnp.dtype(x.dtype).itemsize)

    # Ragged last tile: pad rows in the wrapper, slice the result back.
    n_blocks = (N + tile_n - 1) // tile_n  # pl.cdiv, done host-side
    N_pad = n_blocks * tile_n
    x_in = jnp.pad(x, ((0, N_pad - N), (0, 0))) if N_pad != N else x

    out = pl.pallas_call(
        _normalize_scale_kernel,
        out_shape=jax.ShapeDtypeStruct((N_pad, D), x.dtype),
        grid_spec=pltpu.PrefetchScalarGridSpec(
            num_scalar_prefetch=0,
            grid=(n_blocks,),
            in_specs=[
                pl.BlockSpec((tile_n, D), lambda i: (i, 0)),  # x row tile
                # Constant index_map -> the (1, D) weight is fetched once and
                # stays resident across all grid steps.
                pl.BlockSpec((1, D), lambda i: (0, 0)),
            ],
            out_specs=pl.BlockSpec((tile_n, D), lambda i: (i, 0)),
        ),
        compiler_params=pltpu.CompilerParams(
            dimension_semantics=("parallel",),     # shards rows across v7x's 2 TCs
            vmem_limit_bytes=48 * 1024 * 1024,     # headroom for the large tiles
        ),
    )(x_in, weight)

    return out[:N] if N_pad != N else out


if __name__ == "__main__":
    key = jax.random.PRNGKey(0)

    # Small shapes consistent with the module: a batch of feature vectors.
    # NOTE: for real workloads D should be a multiple of 128 (lane-dense
    # stores); at tiny D like 32 most of each vreg/DMA beat is masked off.
    N, D = 8, 32
    init_norm = 20.0

    x = jax.random.normal(key, (N, D), dtype=jnp.float32)
    # Deterministic parameter init, as in __init__: ones(1, dim) * init_norm
    weight = jnp.ones((1, D), dtype=jnp.float32) * init_norm

    out = normalize_scale(x, weight)
    out = jax.block_until_ready(out)

    # Pure-JAX reference check (same semantics as F.normalize * weight).
    norm = jnp.sqrt(jnp.sum(x * x, axis=1, keepdims=True))
    ref = x / jnp.maximum(norm, EPS) * weight
    assert out.shape == ref.shape
    assert jnp.allclose(out, ref, atol=1e-5, rtol=1e-5)

    # Also exercise the ragged / large-tile path once (N not divisible by tile).
    N2 = 37
    x2 = jax.random.normal(jax.random.PRNGKey(1), (N2, D), dtype=jnp.float32)
    out2 = jax.block_until_ready(normalize_scale(x2, weight))
    norm2 = jnp.sqrt(jnp.sum(x2 * x2, axis=1, keepdims=True))
    ref2 = x2 / jnp.maximum(norm2, EPS) * weight
    assert out2.shape == ref2.shape
    assert jnp.allclose(out2, ref2, atol=1e-5, rtol=1e-5)

    print("KERNEL_OK")
</pallas_src>

<mosaic_0001>
module attributes {stable_mosaic.version = 11 : i64} {
  func.func @_normalize_scale_kernel(%arg0: i32, %arg1: memref<8x32xf32, #tpu.memory_space<vmem>>, %arg2: memref<1x32xf32, #tpu.memory_space<vmem>>, %arg3: memref<8x32xf32, #tpu.memory_space<vmem>>) attributes {dimension_semantics = [#tpu.dimension_semantics<parallel>], iteration_bounds = array<i64: 1>, scalar_prefetch = 0 : i64, scratch_operands = 0 : i64, tpu.core_type = #tpu.core_type<tc>, window_params = [{transform_indices = @transform_0, window_bounds = array<i64: 8, 32>}, {pipeline_mode = #tpu.pipeline_mode<synchronous>, transform_indices = @transform_1, window_bounds = array<i64: 1, 32>}, {transform_indices = @transform_2, window_bounds = array<i64: 8, 32>}]} {
    %c0 = arith.constant 0 : index
    %c0_0 = arith.constant 0 : index
    %0 = vector.load %arg1[%c0, %c0_0] : memref<8x32xf32, #tpu.memory_space<vmem>>, vector<8x32xf32>
    %c0_1 = arith.constant 0 : index
    %c0_2 = arith.constant 0 : index
    %1 = vector.load %arg2[%c0_1, %c0_2] : memref<1x32xf32, #tpu.memory_space<vmem>>, vector<1x32xf32>
    %2 = arith.mulf %0, %0 : vector<8x32xf32>
    %cst = arith.constant dense<0.000000e+00> : vector<8xf32>
    %3 = vector.multi_reduction <add>, %2, %cst [1] : vector<8x32xf32> to vector<8xf32>
    %4 = vector.shape_cast %3 : vector<8xf32> to vector<8x1xf32>
    %cst_3 = arith.constant 1.000000e-24 : f32
    %5 = vector.broadcast %cst_3 : f32 to vector<8x1xf32>
    %6 = arith.maximumf %4, %5 : vector<8x1xf32>
    %7 = math.rsqrt %6 : vector<8x1xf32>
    %8 = vector.broadcast %7 : vector<8x1xf32> to vector<8x32xf32>
    %9 = arith.mulf %0, %8 : vector<8x32xf32>
    %10 = vector.broadcast %1 : vector<1x32xf32> to vector<8x32xf32>
    %11 = arith.mulf %9, %10 : vector<8x32xf32>
    %c0_4 = arith.constant 0 : index
    %c0_5 = arith.constant 0 : index
    %12 = vector.load %arg3[%c0_4, %c0_5] : memref<8x32xf32, #tpu.memory_space<vmem>>, vector<8x32xf32>
    tpu.vector_store %arg3[%c0_4, %c0_5], %11 {strides = array<i32>} : memref<8x32xf32, #tpu.memory_space<vmem>>, vector<8x32xf32>,
    return
  }
  func.func @transform_0(%arg0: i32) -> (i32, i32) {
    %c0_i32 = arith.constant 0 : i32
    %c0_i32_0 = arith.constant 0 : i32
    return %arg0, %c0_i32 : i32, i32
  }
  func.func @transform_1(%arg0: i32) -> (i32, i32) {
    %c0_i32 = arith.constant 0 : i32
    %c0_i32_0 = arith.constant 0 : i32
    %c0_i32_1 = arith.constant 0 : i32
    return %c0_i32, %c0_i32_0 : i32, i32
  }
  func.func @transform_2(%arg0: i32) -> (i32, i32) {
    %c0_i32 = arith.constant 0 : i32
    %c0_i32_0 = arith.constant 0 : i32
    return %arg0, %c0_i32 : i32, i32
  }
}

</mosaic_0001>

<llo_original>
// kernel: tpu_custom_call.1
$region0: #{tpu_custom_call.1}
  #allocation0 [shape = 'u32[]', space=smem, size = 0x4, offset = 0x4, fixed_abs, tag = 'smem constant byte address 0x4 - core index']
  #allocation1 [shape = 'u32[144,128]{1,0:T(1,128)}', space=vmem, size = 0x12000, scoped, tag = 'internal scratch']
  %s0 = inlined_call_operand.hbm [shape: f32[8,32], index: 0, kind: input, shape index: {}]
  %s1 = inlined_call_operand.vmem [shape: f32[1,32], index: 1, kind: input, shape index: {}]
  %s2 = inlined_call_operand.hbm [shape: f32[8,32], index: 2, kind: output, shape index: {}]
  %s3 = sld [smem:[#allocation0]]
  $region22: #{tpu_custom_call.1} parent=0
    _
  %s5 = ssub.s32 1, %s3
  %s6 = scalar_select 0, %s5, %s3
  $region1: #{tpu_custom_call.1} parent=0
    #allocation2 [shape = 'u8[4096]{0}', space=vmem, size = 0x1000, scoped, tag = 'input window, operand 0, single buffered']
    #allocation3 [shape = 's32[1]{0}', space=sflag, size = 0x4, scoped, tag = 'scoped memory for tpu_custom_call.1']
    #allocation4 [shape = 's32[1]{0}', space=sflag, size = 0x4, scoped, tag = 'scoped memory for tpu_custom_call.1']
    #allocation5 [shape = 'u8[4096]{0}', space=vmem, size = 0x1000, scoped, tag = 'output window, operand 0, single buffered']
    %7 = vsyncpa [#allocation3], 0
    %8 = vsyncpa [#allocation4], 0
    // Predicated region
    $region2: #{tpu_custom_call.1} parent=1 // pred_check
      _
    $region3: #{tpu_custom_call.1} parent=1 // pred_check_branch
      %10 = sbr.rel (0) target = $region5
    $region4: #{tpu_custom_call.1} parent=1 // pred_region
      %s12 = ssub.s32 128, 128
      %13 = vsyncadd [#allocation3], %s12
      %s15 = sshll.u32 [#allocation2], 4
      %s16 = int_to_ptr.vmem [resolvable:$true] %s15
      %18 = dma.hbm_to_vmem [thread:$0]  %s0, 128, %s16, [#allocation3]
    $region5: #{tpu_custom_call.1} parent=1 // pred_fallthru
      _
    // Predicated region
    $region6: #{tpu_custom_call.1} parent=1 // pred_check
      _
    $region7: #{tpu_custom_call.1} parent=1 // pred_check_branch
      %20 = sbr.rel (0) target = $region9
    $region8: #{tpu_custom_call.1} parent=1 // pred_region
      _
    $region9: #{tpu_custom_call.1} parent=1 // pred_fallthru
      _
    // Predicated region
    $region10: #{tpu_custom_call.1} parent=1 // pred_check
      _
    $region11: #{tpu_custom_call.1} parent=1 // pred_check_branch
      %22 = sbr.rel (0) target = $region13
    $region12: #{tpu_custom_call.1} parent=1 // pred_region
      %23 = dma.done [#allocation3], 128
    $region13: #{tpu_custom_call.1} parent=1 // pred_fallthru
      _
    %v24 = vld [vmem:[#allocation2] sm:$0xff]
    %v25 = vld [vmem:[%s1] sm:$0x1]
    %v26 = vmul.f32 %v24, %v24
    %vm27 = vcmask 261120
    %v28 = vsel %vm27, %v26, 0.0
    %29 = vadd.xlane.f32.xlu0 %v28
    %v30 = vpop.xlane.xlu0 %29
    %v31 = vmax.f32 %v30, 1e-24
    %v32 = vrsqrt.pop %v31
    %v33 = vmul.f32 %v24, %v32
    %v35 = vlaneseq
    %v36 = vshrl.u32 %v35, 7
    %v37 = vsub.s32 0, %v36
    %v38 = vrot.slane %v25, %v37
    %v40 = vmul.f32 %v33, %v38
    %41 = vst.msk [vmem:[#allocation5] sm:$0xff] %vm27, %v40
    // Predicated region
    $region14: #{tpu_custom_call.1} parent=1 // pred_check
      _
    $region15: #{tpu_custom_call.1} parent=1 // pred_check_branch
      %43 = sbr.rel (0) target = $region17
    $region16: #{tpu_custom_call.1} parent=1 // pred_region
      %s45 = ssub.s32 128, 128
      %46 = vsyncadd [#allocation4], %s45
      %s48 = sshll.u32 [#allocation5], 4
      %s49 = int_to_ptr.vmem [resolvable:$true] %s48
      %51 = dma.vmem_to_hbm [thread:$0]  %s49, 128, %s2, [#allocation4]
    $region17: #{tpu_custom_call.1} parent=1 // pred_fallthru
      _
    // Predicated region
    $region18: #{tpu_custom_call.1} parent=1 // pred_check
      _
    $region19: #{tpu_custom_call.1} parent=1 // pred_check_branch
      %53 = sbr.rel (0) target = $region21
    $region20: #{tpu_custom_call.1} parent=1 // pred_region
      %54 = dma.done [#allocation4], 128
    $region21: #{tpu_custom_call.1} parent=1 // pred_fallthru
      _
    %55 = vsyncpa [#allocation3], 1
    %56 = vsyncpa [#allocation4], 1

</llo_original>
